<compile_context>
chip_gen: v7x
topology: tpu7x:2x2x1
jax: 0.10.0
libtpu: 0.0.40
codegen_flags: <defaults>
</compile_context>

<pallas_src>
import jax
import jax.numpy as jnp
from jax.experimental import pallas as pl
from jax.experimental.pallas import tpu as pltpu

F32 = jnp.float32


# ---------------- Pallas kernels ---------------------------------------------

def node_proj_kernel(h_ref, w_ref, b_ref, p_ref):
    """Grid step i in {0=src-half, 1=dst-half}: P_half = h @ W_half + b_half."""
    p_ref[...] = (jnp.dot(h_ref[...], w_ref[...], preferred_element_type=F32)
                  + b_ref[...])


def edge_update_kernel(p_ref, sidx_ref, didx_ref, e_ref, w1e_ref, out_ref):
    """Per edge tile: fused src+dst gather of projected rows + edge term + LeakyReLU."""
    two_n = p_ref.shape[0]
    n = two_n // 2
    te = out_ref.shape[0]

    sidx = sidx_ref[...]                    # [TE, 1] int32 (src node ids)
    didx = didx_ref[...] + n                # [TE, 1] int32 (dst ids, offset to dst half)

    # Combined one-hot built in-registers (no HBM traffic for it):
    # column j hits either the src row (j < N) or the dst row (j >= N).
    col = jax.lax.broadcasted_iota(jnp.int32, (te, two_n), 1)          # [TE, 2N]
    onehot = jnp.logical_or(col == sidx, col == didx).astype(F32)      # [TE, 2N]

    # Single K=2N MXU matmul: gathers P[src] + P[dst] (bias folded into src half).
    gathered = jnp.dot(onehot, p_ref[...], preferred_element_type=F32)  # [TE, out]

    # Width-1 edge feature stays a VPU broadcast-mul.
    x = gathered + e_ref[...] * w1e_ref[...]
    out_ref[...] = jnp.where(x > 0, x, 0.01 * x)


# ---------------- helpers -----------------------------------------------------

def _pick_edge_tile(E, cap=512):
    """Largest 8-aligned divisor of E that is <= cap and gives a >=2-step grid."""
    start = min(cap, E)
    if E >= 16 and start == E:
        start = E // 2
    for cand in range(start, 7, -1):
        if E % cand == 0 and cand % 8 == 0:
            return cand
    return E


# ---------------- wrapper -----------------------------------------------------

def dti_conv_graph3_forward(atom_feats, bond_feats, src_idx, dst_idx, params,
                            *, edge_tile=None):
    """atom_feats [N, F], bond_feats [E, 1], src_idx/dst_idx [E] int -> [E, out_dim]."""
    N, Fn = atom_feats.shape
    E = bond_feats.shape[0]
    w1_w, w1_b = params["w1_w"], params["w1_b"]       # torch layout [out, 2F+1], [out]
    w2_w, w2_b = params["w2_w"], params["w2_b"]       # torch layout [out, F],    [out]
    out_dim = w1_w.shape[0]

    # ----- host-side weight folding (exact reassociation of the torch math) ---
    w1_t = w1_w.T                                     # [2F+1, out]
    w2_t = w2_w.T                                     # [F, out]
    w_src = w1_t[:Fn] + w2_t                          # [F, out]
    w_dst = w1_t[Fn:2 * Fn] + w2_t                    # [F, out]
    w_stacked = jnp.stack([w_src, w_dst])             # [2, F, out]
    bias = (w1_b + w2_b).reshape(1, out_dim)          # [1, out]
    b_stacked = jnp.stack([bias, jnp.zeros_like(bias)])   # [2, 1, out] (src half only)
    w1_e = w1_t[2 * Fn:2 * Fn + 1]                    # [1, out]

    # ----- per-node projection: P_stacked = [h@w_src + b ; h@w_dst] -----------
    p_stacked = pl.pallas_call(
        node_proj_kernel,
        out_shape=jax.ShapeDtypeStruct((2 * N, out_dim), F32),
        grid_spec=pltpu.PrefetchScalarGridSpec(
            num_scalar_prefetch=0,
            grid=(2,),
            in_specs=[
                pl.BlockSpec((N, Fn), lambda i: (0, 0)),                 # h (resident)
                pl.BlockSpec((None, Fn, out_dim), lambda i: (i, 0, 0)),  # W half
                pl.BlockSpec((None, 1, out_dim), lambda i: (i, 0, 0)),   # bias half
            ],
            out_specs=pl.BlockSpec((N, out_dim), lambda i: (i, 0)),
        ),
        compiler_params=pltpu.CompilerParams(
            dimension_semantics=("arbitrary",)),
    )(atom_feats, w_stacked, b_stacked)

    # ----- edge kernel, index-gather, tiled over edges ------------------------
    src_col = src_idx.reshape(E, 1).astype(jnp.int32)
    dst_col = dst_idx.reshape(E, 1).astype(jnp.int32)

    if edge_tile is None:
        edge_tile = _pick_edge_tile(E)
    assert E % edge_tile == 0 and (edge_tile == E or edge_tile % 8 == 0)
    grid = (E // edge_tile,)

    out = pl.pallas_call(
        edge_update_kernel,
        out_shape=jax.ShapeDtypeStruct((E, out_dim), F32),
        grid_spec=pltpu.PrefetchScalarGridSpec(
            num_scalar_prefetch=0,
            grid=grid,
            in_specs=[
                pl.BlockSpec((2 * N, out_dim), lambda i: (0, 0)),    # P (resident)
                pl.BlockSpec((edge_tile, 1), lambda i: (i, 0)),      # src indices
                pl.BlockSpec((edge_tile, 1), lambda i: (i, 0)),      # dst indices
                pl.BlockSpec((edge_tile, 1), lambda i: (i, 0)),      # edge features
                pl.BlockSpec((1, out_dim), lambda i: (0, 0)),        # w1_e row
            ],
            out_specs=pl.BlockSpec((edge_tile, out_dim), lambda i: (i, 0)),
        ),
        compiler_params=pltpu.CompilerParams(
            dimension_semantics=("parallel",),
            vmem_limit_bytes=64 * 1024 * 1024),
    )(p_stacked, src_col, dst_col, bond_feats, w1_e)
    return out


# ---------------- main --------------------------------------------------------

if __name__ == "__main__":
    key = jax.random.PRNGKey(0)
    N, E = 32, 128                    # nodes, edges
    IN_DIM, OUT_DIM = 33, 128         # node feat dim = IN_DIM - 1 = 32, edge feat dim = 1
    Fn = IN_DIM - 1

    kh, ke, ks, kd, kw1, kb1, kw2, kb2 = jax.random.split(key, 8)
    atom_feats = jax.random.normal(kh, (N, Fn), F32)
    bond_feats = jax.random.normal(ke, (E, 1), F32)
    src_idx = jax.random.randint(ks, (E,), 0, N)
    dst_idx = jax.random.randint(kd, (E,), 0, N)

    params = dict(
        w1_w=0.1 * jax.random.normal(kw1, (OUT_DIM, 2 * Fn + 1), F32),
        w1_b=0.1 * jax.random.normal(kb1, (OUT_DIM,), F32),
        w2_w=0.1 * jax.random.normal(kw2, (OUT_DIM, Fn), F32),
        w2_b=0.1 * jax.random.normal(kb2, (OUT_DIM,), F32),
    )

    out = dti_conv_graph3_forward(atom_feats, bond_feats, src_idx, dst_idx, params)
    jax.block_until_ready(out)

    # pure-JAX reference using the UNFOLDED torch-layout weights
    h_src = atom_feats[src_idx]
    h_dst = atom_feats[dst_idx]
    init = jnp.concatenate([h_src, h_dst, bond_feats], axis=1)     # [E, 2F+1]
    m = h_src + h_dst                                              # [E, F]
    ref = (init @ params["w1_w"].T + params["w1_b"]
           + m @ params["w2_w"].T + params["w2_b"])
    ref = jnp.where(ref > 0, ref, 0.01 * ref)

    assert out.shape == (E, OUT_DIM) and out.dtype == F32
    assert bool(jnp.all(jnp.isfinite(out)))
    assert bool(jnp.allclose(out, ref, atol=1e-3, rtol=1e-3))
    print("KERNEL_OK")
</pallas_src>

<mosaic_0001>
module attributes {stable_mosaic.version = 11 : i64} {
  func.func @node_proj_kernel(%arg0: i32, %arg1: memref<32x32xf32, #tpu.memory_space<vmem>>, %arg2: memref<1x32x128xf32, #tpu.memory_space<vmem>>, %arg3: memref<1x1x128xf32, #tpu.memory_space<vmem>>, %arg4: memref<32x128xf32, #tpu.memory_space<vmem>>) attributes {dimension_semantics = [#tpu.dimension_semantics<arbitrary>], iteration_bounds = array<i64: 2>, scalar_prefetch = 0 : i64, scratch_operands = 0 : i64, tpu.core_type = #tpu.core_type<tc>, window_params = [{pipeline_mode = #tpu.pipeline_mode<synchronous>, transform_indices = @transform_0, window_bounds = array<i64: 32, 32>}, {transform_indices = @transform_1, window_bounds = array<i64: 1, 32, 128>}, {transform_indices = @transform_2, window_bounds = array<i64: 1, 1, 128>}, {transform_indices = @transform_3, window_bounds = array<i64: 32, 128>}]} {
    %c0 = arith.constant 0 : index
    %c0_0 = arith.constant 0 : index
    %0 = vector.load %arg1[%c0, %c0_0] : memref<32x32xf32, #tpu.memory_space<vmem>>, vector<32x32xf32>
    %c0_1 = arith.constant 0 : index
    %c0_2 = arith.constant 0 : index
    %c0_3 = arith.constant 0 : index
    %1 = vector.load %arg2[%c0_1, %c0_2, %c0_3] : memref<1x32x128xf32, #tpu.memory_space<vmem>>, vector<1x32x128xf32>
    %2 = vector.shape_cast %1 : vector<1x32x128xf32> to vector<32x128xf32>
    %cst = arith.constant dense<0.000000e+00> : vector<32x128xf32>
    %3 = tpu.matmul %0, %2, %cst {dimension_numbers = #tpu.dot_dimension_numbers<[1], [0], [0], [1], [0, 0, 1, 1], [], []>} : vector<32x32xf32>, vector<32x128xf32>, vector<32x128xf32> -> vector<32x128xf32>
    %c0_4 = arith.constant 0 : index
    %c0_5 = arith.constant 0 : index
    %c0_6 = arith.constant 0 : index
    %4 = vector.load %arg3[%c0_4, %c0_5, %c0_6] : memref<1x1x128xf32, #tpu.memory_space<vmem>>, vector<1x1x128xf32>
    %5 = vector.shape_cast %4 : vector<1x1x128xf32> to vector<1x128xf32>
    %6 = vector.broadcast %5 : vector<1x128xf32> to vector<32x128xf32>
    %7 = arith.addf %3, %6 : vector<32x128xf32>
    %c0_7 = arith.constant 0 : index
    %c0_8 = arith.constant 0 : index
    %8 = vector.load %arg4[%c0_7, %c0_8] : memref<32x128xf32, #tpu.memory_space<vmem>>, vector<32x128xf32>
    tpu.vector_store %arg4[%c0_7, %c0_8], %7 {strides = array<i32>} : memref<32x128xf32, #tpu.memory_space<vmem>>, vector<32x128xf32>,
    return
  }
  func.func @transform_0(%arg0: i32) -> (i32, i32) {
    %c0_i32 = arith.constant 0 : i32
    %c0_i32_0 = arith.constant 0 : i32
    %c0_i32_1 = arith.constant 0 : i32
    return %c0_i32, %c0_i32_0 : i32, i32
  }
  func.func @transform_1(%arg0: i32) -> (i32, i32, i32) {
    %c0_i32 = arith.constant 0 : i32
    %c0_i32_0 = arith.constant 0 : i32
    %c0_i32_1 = arith.constant 0 : i32
    return %arg0, %c0_i32, %c0_i32_0 : i32, i32, i32
  }
  func.func @transform_2(%arg0: i32) -> (i32, i32, i32) {
    %c0_i32 = arith.constant 0 : i32
    %c0_i32_0 = arith.constant 0 : i32
    %c0_i32_1 = arith.constant 0 : i32
    return %arg0, %c0_i32, %c0_i32_0 : i32, i32, i32
  }
  func.func @transform_3(%arg0: i32) -> (i32, i32) {
    %c0_i32 = arith.constant 0 : i32
    %c0_i32_0 = arith.constant 0 : i32
    return %arg0, %c0_i32 : i32, i32
  }
}

</mosaic_0001>

<llo_original>
// kernel: tpu_custom_call.1
$region0: #{tpu_custom_call.1}
  #allocation0 [shape = 'u32[]', space=smem, size = 0x4, offset = 0x4, fixed_abs, tag = 'smem constant byte address 0x4 - core index']
  #allocation1 [shape = 'u32[144,128]{1,0:T(1,128)}', space=vmem, size = 0x12000, scoped, tag = 'internal scratch']
  %s0 = inlined_call_operand.hbm [shape: f32[32,32], index: 0, kind: input, shape index: {}]
  %s1 = inlined_call_operand.hbm [shape: f32[2,32,128], index: 1, kind: input, shape index: {}]
  %s2 = inlined_call_operand.vmem [shape: f32[2,1,128], index: 2, kind: input, shape index: {}]
  %s3 = inlined_call_operand.hbm [shape: f32[64,128], index: 3, kind: output, shape index: {}]
  %s4 = sld [smem:[#allocation0]]
  $region53: #{tpu_custom_call.1} parent=0
    _
  %s6 = ssub.s32 1, %s4
  %s7 = scalar_select 0, %s6, %s4
  $region1: #{tpu_custom_call.1} parent=0
    #allocation2 [shape = 'u8[16384]{0}', space=vmem, size = 0x4000, scoped, tag = 'input window, operand 0, single buffered']
    #allocation3 [shape = 's32[2]{0}', space=sflag, size = 0x8, scoped, tag = 'scoped memory for tpu_custom_call.1']
    #allocation4 [shape = 's32[2]{0}', space=sflag, size = 0x8, scoped, tag = 'scoped memory for tpu_custom_call.1']
    #allocation5 [shape = 'u8[32768]{0}', space=vmem, size = 0x8000, scoped, tag = 'input window, operand 1']
    #allocation6 [shape = 's32[2]{0}', space=sflag, size = 0x8, scoped, tag = 'scoped memory for tpu_custom_call.1']
    #allocation7 [shape = 'u8[32768]{0}', space=vmem, size = 0x8000, scoped, tag = 'output window, operand 0']
    %8 = vsyncpa [#allocation3], 0
    %9 = vsyncpa [#allocation6], 0
    %s10 = scalar_lea.sflag [#allocation6], 1
    %11 = vsyncpa %s10, 0
    %12 = vsyncpa [#allocation4], 0
    %s13 = scalar_lea.sflag [#allocation4], 1
    %14 = vsyncpa %s13, 0
    loop: start=0, step=1, limit=4
    $region2: #{tpu_custom_call.1} parent=1 // loop_pre_header
      _
    $region3: #{tpu_custom_call.1} parent=1 // loop_header
      %s16 = sphi 0, %s20
      %p17 = scmp.ge.s32.totalorder %s16, 4
      %s24 = sphi 0, %s24
      %s26 = sphi 0, %s24
      %s27 = sphi 0, %s26
      %s41 = sphi 0, %s27
      %s47 = sphi 0, %s49
      %s50 = sphi 0, %s47
      %s51 = sphi 0, %s50
      %s67 = sphi 0, %s51
      %s73 = sphi 0, %s75
      %s76 = sphi 0, %s73
      %s77 = sphi 0, %s76
      %s93 = sphi 0, %s77
      %s99 = sphi 0, %s101
      %s102 = sphi 0, %s99
      %s103 = sphi 0, %s102
      %s119 = sphi 0, %s103
    $region4: #{tpu_custom_call.1} parent=1 // loop_header_branch
      %19 = sbr.rel (%p17) target = $region8
    $region5: #{tpu_custom_call.1} parent=1 // loop_body
      %s21 = ssub.s32 %s16, 1
      %s22 = ssub.s32 %s16, 2
      %s23 = sadd.s32 %s16, 1
      %s25 = sadd.s32 %s24, 1
      %p28 = scmp.eq.s32.totalorder %s16, 1
      %p29 = scmp.ne.s32.totalorder %s24, %s26
      %p30 = scmp.eq.s32.totalorder %s16, 0
      %p31 = por %p29, %p30
      %p32 = scmp.ne.s32.totalorder %s24, %s26
      %p33 = scmp.eq.s32.totalorder %s21, 1
      %p34 = por %p32, %p33
      %p35 = scmp.ne.s32.totalorder %s26, %s27
      %p36 = scmp.eq.s32.totalorder %s21, 0
      %p37 = por %p35, %p36
      %p38 = scmp.ne.s32.totalorder %s26, %s27
      %p39 = scmp.eq.s32.totalorder %s22, 1
      %p40 = por %p38, %p39
      %p42 = scmp.ne.s32.totalorder %s27, %s41
      %p43 = scmp.eq.s32.totalorder %s22, 0
      %p44 = por %p42, %p43
      %s45 = ssub.s32 %s16, %s23
      %p46 = scmp.eq.s32.totalorder %s45, 0
      %s48 = sadd.s32 %s47, 1
      %s49 = scalar_select %p46, %s47, %s48
      %p52 = pneg %p46
      %p53 = scmp.eq.s32.totalorder %s16, 1
      %p54 = por %p52, %p53
      %p55 = scmp.ne.s32.totalorder %s47, %s50
      %p56 = scmp.eq.s32.totalorder %s16, 0
      %p57 = por %p55, %p56
      %p58 = scmp.ne.s32.totalorder %s47, %s50
      %p59 = scmp.eq.s32.totalorder %s21, 1
      %p60 = por %p58, %p59
      %p61 = scmp.ne.s32.totalorder %s50, %s51
      %p62 = scmp.eq.s32.totalorder %s21, 0
      %p63 = por %p61, %p62
      %p64 = scmp.ne.s32.totalorder %s50, %s51
      %p65 = scmp.eq.s32.totalorder %s22, 1
      %p66 = por %p64, %p65
      %p68 = scmp.ne.s32.totalorder %s51, %s67
      %p69 = scmp.eq.s32.totalorder %s22, 0
      %p70 = por %p68, %p69
      %s71 = ssub.s32 %s16, %s23
      %p72 = scmp.eq.s32.totalorder %s71, 0
      %s74 = sadd.s32 %s73, 1
      %s75 = scalar_select %p72, %s73, %s74
      %p78 = pneg %p72
      %p79 = scmp.eq.s32.totalorder %s16, 1
      %p80 = por %p78, %p79
      %p81 = scmp.ne.s32.totalorder %s73, %s76
      %p82 = scmp.eq.s32.totalorder %s16, 0
      %p83 = por %p81, %p82
      %p84 = scmp.ne.s32.totalorder %s73, %s76
      %p85 = scmp.eq.s32.totalorder %s21, 1
      %p86 = por %p84, %p85
      %p87 = scmp.ne.s32.totalorder %s76, %s77
      %p88 = scmp.eq.s32.totalorder %s21, 0
      %p89 = por %p87, %p88
      %p90 = scmp.ne.s32.totalorder %s76, %s77
      %p91 = scmp.eq.s32.totalorder %s22, 1
      %p92 = por %p90, %p91
      %p94 = scmp.ne.s32.totalorder %s77, %s93
      %p95 = scmp.eq.s32.totalorder %s22, 0
      %p96 = por %p94, %p95
      %s97 = ssub.s32 %s16, %s23
      %p98 = scmp.eq.s32.totalorder %s97, 0
      %s100 = sadd.s32 %s99, 1
      %s101 = scalar_select %p98, %s99, %s100
      %p104 = pneg %p98
      %p105 = scmp.eq.s32.totalorder %s16, 1
      %p106 = por %p104, %p105
      %p107 = scmp.ne.s32.totalorder %s99, %s102
      %p108 = scmp.eq.s32.totalorder %s16, 0
      %p109 = por %p107, %p108
      %p110 = scmp.ne.s32.totalorder %s99, %s102
      %p111 = scmp.eq.s32.totalorder %s21, 1
      %p112 = por %p110, %p111
      %p113 = scmp.ne.s32.totalorder %s102, %s103
      %p114 = scmp.eq.s32.totalorder %s21, 0
      %p115 = por %p113, %p114
      %p116 = scmp.ne.s32.totalorder %s102, %s103
      %p117 = scmp.eq.s32.totalorder %s22, 1
      %p118 = por %p116, %p117
      %p120 = scmp.ne.s32.totalorder %s103, %s119
      %p121 = scmp.eq.s32.totalorder %s22, 0
      %p122 = por %p120, %p121
      %p123 = scmp.le.s32.totalorder 1, %s16
      %p124 = scmp.lt.s32.totalorder %s16, 3
      %p125 = pnand %p123, %p124
      %p126 = pneg %p125
      // Predicated region
      $region9: #{tpu_custom_call.1} parent=5 // pred_check
        _
      $region10: #{tpu_custom_call.1} parent=5 // pred_check_branch
        %128 = sbr.rel (%p125) target = $region12
      $region11: #{tpu_custom_call.1} parent=5 // pred_region
        %s129 = ssub.s32 %s16, 1
        // Predicated region
        $region13: #{tpu_custom_call.1} parent=11 // pred_check
          %p130 = pneg %p37
        $region14: #{tpu_custom_call.1} parent=11 // pred_check_branch
          %132 = sbr.rel (%p130) target = $region16
        $region15: #{tpu_custom_call.1} parent=11 // pred_region
          %s134 = ssub.s32 512, 512
          %135 = vsyncadd [#allocation3], %s134
          %s136 = sshll.u32 [#allocation2], 4
          %s137 = int_to_ptr.vmem [resolvable:$true] %s136
          %142 = dma.hbm_to_vmem [thread:$0]  %s0, 512, %s137, [#allocation3], 128, 128, 8
        $region16: #{tpu_custom_call.1} parent=11 // pred_fallthru
          _
      $region12: #{tpu_custom_call.1} parent=5 // pred_fallthru
        _
      %p143 = scmp.lt.s32.totalorder %s16, 2
      // Predicated region
      $region17: #{tpu_custom_call.1} parent=5 // pred_check
        %p144 = pneg %p143
      $region18: #{tpu_custom_call.1} parent=5 // pred_check_branch
        %146 = sbr.rel (%p144) target = $region20
      $region19: #{tpu_custom_call.1} parent=5 // pred_region
        // Predicated region
        $region21: #{tpu_custom_call.1} parent=19 // pred_check
          %p147 = pneg %p57
        $region22: #{tpu_custom_call.1} parent=19 // pred_check_branch
          %149 = sbr.rel (%p147) target = $region24
        $region23: #{tpu_custom_call.1} parent=19 // pred_region
          %s150 = sand.u32 %s47, 1
          %s151 = scalar_lea.sflag [#allocation6], %s150
          %s152 = sand.u32 %s47, 1
          %s153 = smul.addr %s152, 32
          %s154 = scalar_lea.vmem [#allocation5], %s153
          %s156 = ssub.s32 512, 512
          %157 = vsyncadd %s151, %s156
          %s158 = smul.addr %s16, 4
          %s159 = smul.addr %s158, 128
          %s160 = scalar_lea.hbm %s1, %s159
          %s161 = sshll.u32 %s154, 4
          %s162 = int_to_ptr.vmem [resolvable:$true] %s161
          %167 = dma.hbm_to_vmem [thread:$0]  %s160, 512, %s162, %s151, 128, 128, 8
        $region24: #{tpu_custom_call.1} parent=19 // pred_fallthru
          _
        // Predicated region
        $region25: #{tpu_custom_call.1} parent=19 // pred_check
          %p168 = pneg %p83
        $region26: #{tpu_custom_call.1} parent=19 // pred_check_branch
          %170 = sbr.rel (%p168) target = $region28
        $region27: #{tpu_custom_call.1} parent=19 // pred_region
          %p171 = scmp.lt.s32.totalorder %s16, 1
          %s172 = scalar_select %p171, %s16, 1
          %s173 = scalar_lea.vmem %s2, %s172
        $region28: #{tpu_custom_call.1} parent=19 // pred_fallthru
          _
      $region20: #{tpu_custom_call.1} parent=5 // pred_fallthru
        _
      %p174 = scmp.le.s32.totalorder 1, %s16
      %p175 = scmp.lt.s32.totalorder %s16, 3
      %p176 = pnand %p174, %p175
      %p177 = pneg %p176
      // Predicated region
      $region29: #{tpu_custom_call.1} parent=5 // pred_check
        _
      $region30: #{tpu_custom_call.1} parent=5 // pred_check_branch
        %179 = sbr.rel (%p176) target = $region32
      $region31: #{tpu_custom_call.1} parent=5 // pred_region
        %s180 = ssub.s32 %s16, 1
        // Predicated region
        $region33: #{tpu_custom_call.1} parent=31 // pred_check
          %p181 = pneg %p37
        $region34: #{tpu_custom_call.1} parent=31 // pred_check_branch
          %183 = sbr.rel (%p181) target = $region36
        $region35: #{tpu_custom_call.1} parent=31 // pred_region
          %184 = dma.done [#allocation3], 512
        $region36: #{tpu_custom_call.1} parent=31 // pred_fallthru
          _
        %s185 = sand.u32 %s50, 1
        %s186 = scalar_lea.sflag [#allocation6], %s185
        %s187 = sand.u32 %s50, 1
        %s188 = smul.addr %s187, 32
        %s189 = scalar_lea.vmem [#allocation5], %s188
        // Predicated region
        $region37: #{tpu_custom_call.1} parent=31 // pred_check
          %p190 = pneg %p63
        $region38: #{tpu_custom_call.1} parent=31 // pred_check_branch
          %192 = sbr.rel (%p190) target = $region40
        $region39: #{tpu_custom_call.1} parent=31 // pred_region
          %193 = dma.done %s186, 512
        $region40: #{tpu_custom_call.1} parent=31 // pred_fallthru
          _
        %p194 = pneg %p37
        %p195 = pneg %p34
        %s196 = sand.u32 %s50, 1
        %s197 = scalar_lea.sflag [#allocation6], %s196
        %s198 = sand.u32 %s50, 1
        %s199 = smul.addr %s198, 32
        %s200 = scalar_lea.vmem [#allocation5], %s199
        %p201 = pneg %p63
        %p202 = pneg %p60
        %p203 = scmp.lt.s32.totalorder %s21, 1
        %s204 = scalar_select %p203, %s21, 1
        %s205 = scalar_lea.vmem %s2, %s204
        %p206 = pneg %p89
        %p207 = pneg %p86
        %p208 = pneg %p115
        %p209 = pneg %p112
        %s210 = sand.u32 %s102, 1
        %s211 = scalar_lea.sflag [#allocation4], %s210
        %s212 = sand.u32 %s102, 1
        %s213 = smul.addr %s212, 32
        %s214 = scalar_lea.vmem [#allocation7], %s213
        %p215 = scmp.lt.s32.totalorder %s21, 1
        %s216 = scalar_select %p215, %s21, 1
        %s217 = scalar_lea.vmem %s2, %s216
        %s218 = smul.u32 4, %s21
        %v219 = vld [vmem:[#allocation2] sm:$0xff]
        %v220 = vld [vmem:[#allocation2 + $0x8] sm:$0xff]
        %v221 = vld [vmem:[#allocation2 + $0x10] sm:$0xff]
        %v222 = vld [vmem:[#allocation2 + $0x18] sm:$0xff]
        %v223 = vld [vmem:[%s189] sm:$0xff]
        %v224 = vld [vmem:[%s189 + $0x8] sm:$0xff]
        %v225 = vld [vmem:[%s189 + $0x10] sm:$0xff]
        %v226 = vld [vmem:[%s189 + $0x18] sm:$0xff]
        %v227 = vld [vmem:[%s217] sm:$0x1]
        %v229 = vlaneseq
        %v230 = vshrl.u32 %v229, 7
        %v231 = vsub.s32 0, %v230
        %v232 = vrot.slane %v227, %v231
        %vm234 = vcmask 261120
        %v236 = vsel %vm234, %v219, 0
        %v239 = vsel %vm234, %v220, 0
        %v242 = vsel %vm234, %v221, 0
        %v245 = vsel %vm234, %v222, 0
        %247 = vmatprep.subr.mxu0 0.0
        %248 = vmatpush1.msra.mxu0 %v223
        %249 = vmatprep.subr.mxu0 0.0
        %250 = vmatpush1.msra.mxu0 %v224
        %251 = vmatprep.subr.mxu0 0.0
        %252 = vmatpush1.msra.mxu0 %v225
        %253 = vmatprep.subr.mxu0 0.0
        %254 = vmatpush1.msra.mxu0 %v226
        %255 = vmatprep.subr.mxu0 0.0
        %256 = vmatpush1.msra.mxu0 0.0
        %257 = vmatprep.subr.mxu0 0.0
        %258 = vmatpush1.msra.mxu0 0.0
        %259 = vmatprep.subr.mxu0 0.0
        %260 = vmatpush1.msra.mxu0 0.0
        %261 = vmatprep.subr.mxu0 0.0
        %262 = vmatpush1.msra.mxu0 0.0
        %263 = vmatprep.subr.mxu0 0.0
        %264 = vmatpush1.msra.mxu0 0.0
        %265 = vmatprep.subr.mxu0 0.0
        %266 = vmatpush1.msra.mxu0 0.0
        %267 = vmatprep.subr.mxu0 0.0
        %268 = vmatpush1.msra.mxu0 0.0
        %269 = vmatprep.subr.mxu0 0.0
        %270 = vmatpush1.msra.mxu0 0.0
        %271 = vmatprep.subr.mxu0 0.0
        %272 = vmatpush1.msra.mxu0 0.0
        %273 = vmatprep.subr.mxu0 0.0
        %274 = vmatpush1.msra.mxu0 0.0
        %275 = vmatprep.subr.mxu0 0.0
        %276 = vmatpush1.msra.mxu0 0.0
        %277 = vmatprep.subr.mxu0 0.0
        %278 = vmatpush1.msra.mxu0 0.0
        %279 = vmatprep.subr.mxu0 0.0
        %280 = vmatpush1.msra.mxu0 0.0
        %281 = vmatprep.subr.mxu0 0.0
        %282 = vmatpush1.msra.mxu0 0.0
        %283 = vmatprep.subr.mxu0 0.0
        %284 = vmatpush1.msra.mxu0 0.0
        %285 = vmatprep.subr.mxu0 0.0
        %286 = vmatpush1.msra.mxu0 0.0
        %287 = vmatprep.subr.mxu0 0.0
        %288 = vmatpush1.msra.mxu0 0.0
        %289 = vmatprep.subr.mxu0 0.0
        %290 = vmatpush1.msra.mxu0 0.0
        %291 = vmatprep.subr.mxu0 0.0
        %292 = vmatpush1.msra.mxu0 0.0
        %293 = vmatprep.subr.mxu0 0.0
        %294 = vmatpush1.msra.mxu0 0.0
        %295 = vmatprep.subr.mxu0 0.0
        %296 = vmatpush1.msra.mxu0 0.0
        %297 = vmatprep.subr.mxu0 0.0
        %298 = vmatpush1.msra.mxu0 0.0
        %299 = vmatprep.subr.mxu0 0.0
        %300 = vmatpush1.msra.mxu0 0.0
        %301 = vmatprep.subr.mxu0 0.0
        %302 = vmatpush1.msra.mxu0 0.0
        %303 = vmatprep.subr.mxu0 0.0
        %304 = vmatpush1.msra.mxu0 0.0
        %305 = vmatprep.subr.mxu0 0.0
        %306 = vmatpush1.msra.mxu0 0.0
        %307 = vmatprep.subr.mxu0 0.0
        %308 = vmatpush1.msra.mxu0 0.0
        %309 = vmatprep.subr.mxu0 0.0
        %310 = vmatpush1.msra.mxu0 0.0
        %311 = vmatprep.mubr.f32.mxu0 0.0
        %312 = vmatmul.mubr.f32.gmra.mrb[0].mxu0 %v236
        %v313 = vpop.f32.mrb[0].mxu0
        %v314 = vadd.f32 %v232, %v313
        %v315 = vpop.f32.mrb[0].mxu0
        %316 = vmatprep.mubr.f32.mxu0 0.0
        %317 = vmatmul.mubr.f32.gmra.mrb[0].mxu0 %v239
        %v318 = vpop.f32.mrb[0].mxu0
        %v319 = vadd.f32 %v232, %v318
        %v320 = vpop.f32.mrb[0].mxu0
        %321 = vmatprep.mubr.f32.mxu0 0.0
        %322 = vmatmul.mubr.f32.gmra.mrb[0].mxu0 %v242
        %v323 = vpop.f32.mrb[0].mxu0
        %v324 = vadd.f32 %v232, %v323
        %v325 = vpop.f32.mrb[0].mxu0
        %326 = vmatprep.mubr.f32.mxu0 0.0
        %327 = vmatmul.mubr.f32.gmra.mrb[0].mxu0 %v245
        %v328 = vpop.f32.mrb[0].mxu0
        %v329 = vadd.f32 %v232, %v328
        %v330 = vpop.f32.mrb[0].mxu0
        %331 = vdwg.mxu0
        %332 = vst [vmem:[%s214] sm:$0xff] %v314
        %333 = vst [vmem:[%s214 + $0x8] sm:$0xff] %v319
        %334 = vst [vmem:[%s214 + $0x10] sm:$0xff] %v324
        %335 = vst [vmem:[%s214 + $0x18] sm:$0xff] %v329
        %s336 = sand.u32 %s102, 1
        %s337 = scalar_lea.sflag [#allocation4], %s336
        %s338 = sand.u32 %s102, 1
        %s339 = smul.addr %s338, 32
        %s340 = scalar_lea.vmem [#allocation7], %s339
        // Predicated region
        $region41: #{tpu_custom_call.1} parent=31 // pred_check
          %p341 = pneg %p112
        $region42: #{tpu_custom_call.1} parent=31 // pred_check_branch
          %343 = sbr.rel (%p341) target = $region44
        $region43: #{tpu_custom_call.1} parent=31 // pred_region
          %s344 = smul.u32 4, %s21
          %s346 = ssub.s32 512, 512
          %347 = vsyncadd %s337, %s346
          %s348 = smul.addr %s344, 128
          %s349 = scalar_lea.hbm %s3, %s348
          %s350 = sshll.u32 %s340, 4
          %s351 = int_to_ptr.vmem [resolvable:$true] %s350
          %356 = dma.vmem_to_hbm [thread:$0]  %s351, 512, %s349, %s337, 128, 128, 8
        $region44: #{tpu_custom_call.1} parent=31 // pred_fallthru
          _
      $region32: #{tpu_custom_call.1} parent=5 // pred_fallthru
        _
      %p357 = scmp.le.s32.totalorder 2, %s16
      // Predicated region
      $region45: #{tpu_custom_call.1} parent=5 // pred_check
        %p358 = pneg %p357
      $region46: #{tpu_custom_call.1} parent=5 // pred_check_branch
        %360 = sbr.rel (%p358) target = $region48
      $region47: #{tpu_custom_call.1} parent=5 // pred_region
        %s361 = ssub.s32 %s16, 2
        // Predicated region
        $region49: #{tpu_custom_call.1} parent=47 // pred_check
          %p362 = pneg %p118
        $region50: #{tpu_custom_call.1} parent=47 // pred_check_branch
          %364 = sbr.rel (%p362) target = $region52
        $region51: #{tpu_custom_call.1} parent=47 // pred_region
          %s365 = sand.u32 %s103, 1
          %s366 = scalar_lea.sflag [#allocation4], %s365
          %s367 = sand.u32 %s103, 1
          %s368 = smul.addr %s367, 32
          %s369 = scalar_lea.vmem [#allocation7], %s368
          %370 = dma.done %s366, 512
        $region52: #{tpu_custom_call.1} parent=47 // pred_fallthru
          _
      $region48: #{tpu_custom_call.1} parent=5 // pred_fallthru
        _
    $region6: #{tpu_custom_call.1} parent=1 // loop_footer
      %s20 = sadd.s32 1, %s16
    $region7: #{tpu_custom_call.1} parent=1 // loop_footer_branch
      %15 = sbr.rel target = $region3
    $region8: #{tpu_custom_call.1} parent=1 // loop_exit
      _
    %371 = vsyncpa [#allocation3], 1
    %s372 = scalar_lea.sflag [#allocation3], 1
    %373 = vsyncpa %s372, 1
    %374 = vsyncpa [#allocation6], 1
    %s375 = scalar_lea.sflag [#allocation6], 1
    %376 = vsyncpa %s375, 1
    %377 = vsyncpa [#allocation4], 1
    %s378 = scalar_lea.sflag [#allocation4], 1
    %379 = vsyncpa %s378, 1

</llo_original>
